<compile_context>
chip_gen: v6e
topology: v6e:2x2x1
jax: 0.10.0
libtpu: 0.0.40
codegen_flags: <defaults>
</compile_context>

<pallas_src>
import functools

import jax
import jax.numpy as jnp
from jax.experimental import pallas as pl
from jax.experimental.pallas import tpu as pltpu

EPS = 1e-5  # nn.LayerNorm default


def _patch_merge_kernel(x_ref, w_ref, b_ref, o_ref):
    # x_ref: (bh, 2, W2, 2C)  contiguous slab of bh merged-pixel rows;
    #        dim 1 is h-parity, channels are [w-even C | w-odd C].
    # w_ref: (2, 2C, 2C)      gamma-folded W^T row blocks; [0] -> even-h half
    #                         ([x0|x2]), [1] -> odd-h half ([x1|x3]).
    # b_ref: (1, 2C)          precomputed beta @ W^T.
    # o_ref: (bh, W2, 2C)
    bh, _, w2, c2 = x_ref.shape
    co = o_ref.shape[-1]
    n_inv = 1.0 / (2 * c2)  # LayerNorm is over the full 4C feature vector

    x = x_ref[...]
    xe = x[:, 0].astype(jnp.float32)          # (bh, W2, 2C)  [x0 | x2]
    xo = x[:, 1].astype(jnp.float32)          # (bh, W2, 2C)  [x1 | x3]

    # One-pass LN statistics over the (virtual) 4C concatenation.
    s = jnp.sum(xe, axis=-1, keepdims=True) + jnp.sum(xo, axis=-1, keepdims=True)
    sq = (jnp.sum(xe * xe, axis=-1, keepdims=True)
          + jnp.sum(xo * xo, axis=-1, keepdims=True))
    mean = s * n_inv
    var = jnp.maximum(sq * n_inv - mean * mean, 0.0)
    inv = jax.lax.rsqrt(var + EPS)

    # gamma/beta are folded into w_ref / b_ref -> minimal f32 VALU epilogue.
    xne = (xe - mean) * inv
    xno = (xo - mean) * inv

    we = w_ref[0]
    wo = w_ref[1]
    # Relayout possible here when W2 % sublane != 0 (see header note).
    lhs_e = xne.reshape(bh * w2, c2).astype(we.dtype)
    lhs_o = xno.reshape(bh * w2, c2).astype(wo.dtype)
    acc = jnp.dot(lhs_e, we, preferred_element_type=jnp.float32)
    acc = acc + jnp.dot(lhs_o, wo, preferred_element_type=jnp.float32)
    acc = acc + b_ref[...].astype(jnp.float32)
    o_ref[...] = acc.reshape(bh, w2, co).astype(o_ref.dtype)


@functools.partial(jax.jit, static_argnames=("input_resolution",))
def patch_merging(x, gamma, beta, w_red, *, input_resolution):
    """PatchMerging forward.

    x:      (B, H*W, C)
    gamma:  (4C,)    LayerNorm weight
    beta:   (4C,)    LayerNorm bias
    w_red:  (2C, 4C) nn.Linear weight (out_features, in_features), bias-free
    returns (B, H/2 * W/2, 2C)
    """
    H, W = input_resolution
    B, L, C = x.shape
    assert L == H * W, "input feature has wrong size"
    assert H % 2 == 0 and W % 2 == 0, "x size are not even."
    H2, W2 = H // 2, W // 2
    C2, Co = 2 * C, 2 * C
    R = B * H2  # flattened merged-row axis (batch x H/2)

    # Free contiguous reinterpretation: (b, hh, p, ww, wp*C + c) maps to
    # x[b, (2*hh + p)*W + 2*ww + wp, c].
    xr = x.reshape(R, 2, W2, C2)

    # ---- fold LayerNorm affine params into the reduction weight / bias ----
    wt4 = w_red.astype(jnp.float32).T.reshape(4, C, Co)   # quadrant row blocks of W^T
    we = jnp.concatenate([wt4[0], wt4[2]], axis=0)        # rows matching [x0|x2]
    wo = jnp.concatenate([wt4[1], wt4[3]], axis=0)        # rows matching [x1|x3]
    g4 = gamma.astype(jnp.float32).reshape(4, C)
    b4 = beta.astype(jnp.float32).reshape(4, C)
    ge = jnp.concatenate([g4[0], g4[2]])
    go = jnp.concatenate([g4[1], g4[3]])
    be = jnp.concatenate([b4[0], b4[2]])
    bo = jnp.concatenate([b4[1], b4[3]])
    bias = (be @ we + bo @ wo).reshape(1, Co)              # beta @ W^T, f32
    w_stk = jnp.stack([we * ge[:, None], wo * go[:, None]],
                      axis=0).astype(w_red.dtype)          # (2, 2C, 2C)

    # ---- generation-aware VMEM budgeting / tile sizing --------------------
    x_item = jnp.dtype(x.dtype).itemsize
    w_item = jnp.dtype(w_red.dtype).itemsize
    try:
        vmem_cap = int(pltpu.get_tpu_info().vmem_capacity_bytes)
    except Exception:
        vmem_cap = 64 * 2 ** 20                 # conservative (v7x per-TC VMEM)
    vmem_limit = (vmem_cap * 3) // 4            # ~48 MiB v7x, ~96 MiB v5e/v6e

    in_row = 2 * W2 * C2 * x_item               # one merged row, both parities
    out_row = W2 * Co * x_item
    # f32 temporaries (cast input + normalized copies + accumulator) plus MXU
    # lhs casts when the weight dtype is narrower than f32.
    tmp_row = 3 * 2 * W2 * C2 * 4 + W2 * Co * 4
    if w_item < 4:
        tmp_row += 2 * W2 * C2 * w_item
    row_cost = 2 * in_row + 2 * out_row + tmp_row   # double-buffered in/out
    fixed = (2 * (2 * C2 * Co * w_item)             # weights (double-buffered)
             + 2 * Co * 4                           # bias
             + 4 * 2 ** 20)                         # Mosaic internal scratch headroom

    budget = max(row_cost, vmem_limit - fixed)
    bh = max(1, min(R, budget // row_cost))
    bh = min(bh, max(1, (8 * 2 ** 20) // in_row))   # ~8 MiB of input per step
    if R >= 2:
        bh = min(bh, pl.cdiv(R, 2))                 # >=2 steps: keep both v7x TCs busy
    grid = (pl.cdiv(R, bh),)

    out = pl.pallas_call(
        _patch_merge_kernel,
        out_shape=jax.ShapeDtypeStruct((R, W2, Co), x.dtype),
        grid_spec=pltpu.PrefetchScalarGridSpec(
            num_scalar_prefetch=0,
            grid=grid,
            in_specs=[
                pl.BlockSpec((bh, 2, W2, C2), lambda i: (i, 0, 0, 0)),
                pl.BlockSpec((2, C2, Co), lambda i: (0, 0, 0)),
                pl.BlockSpec((1, Co), lambda i: (0, 0)),
            ],
            out_specs=pl.BlockSpec((bh, W2, Co), lambda i: (i, 0, 0)),
        ),
        compiler_params=pltpu.CompilerParams(
            dimension_semantics=("parallel",),
            vmem_limit_bytes=int(vmem_limit),
        ),
    )(xr, w_stk, bias)

    return out.reshape(B, H2 * W2, Co)


def _reference(x, gamma, beta, w_red, input_resolution):
    """Pure-JAX reference mirroring the PyTorch forward."""
    H, W = input_resolution
    B, L, C = x.shape
    xv = x.reshape(B, H, W, C)
    x0 = xv[:, 0::2, 0::2, :]
    x1 = xv[:, 1::2, 0::2, :]
    x2 = xv[:, 0::2, 1::2, :]
    x3 = xv[:, 1::2, 1::2, :]
    xm = jnp.concatenate([x0, x1, x2, x3], axis=-1).reshape(B, -1, 4 * C)
    mean = jnp.mean(xm, axis=-1, keepdims=True)
    var = jnp.mean((xm - mean) ** 2, axis=-1, keepdims=True)
    xn = (xm - mean) / jnp.sqrt(var + EPS) * gamma + beta
    return xn @ w_red.T


if __name__ == "__main__":
    # Small shapes consistent with the module: B=2, H=W=16, C=32.
    B, H, W, C = 2, 16, 16, 32
    key = jax.random.PRNGKey(0)
    kx, kg, kb, kw = jax.random.split(key, 4)

    x = jax.random.normal(kx, (B, H * W, C), dtype=jnp.float32)
    gamma = 1.0 + 0.01 * jax.random.normal(kg, (4 * C,), dtype=jnp.float32)
    beta = 0.01 * jax.random.normal(kb, (4 * C,), dtype=jnp.float32)
    w_red = 0.02 * jax.random.normal(kw, (2 * C, 4 * C), dtype=jnp.float32)

    out = patch_merging(x, gamma, beta, w_red, input_resolution=(H, W))
    out = jax.block_until_ready(out)

    ref = _reference(x, gamma, beta, w_red, (H, W))
    assert out.shape == (B, (H // 2) * (W // 2), 2 * C), out.shape
    assert jnp.allclose(out, ref, atol=1e-4, rtol=1e-4), float(
        jnp.max(jnp.abs(out - ref))
    )
    print("KERNEL_OK")
</pallas_src>

<mosaic_0001>
module attributes {stable_mosaic.version = 11 : i64} {
  func.func @_patch_merge_kernel(%arg0: i32, %arg1: memref<8x2x8x64xf32, #tpu.memory_space<vmem>>, %arg2: memref<2x64x64xf32, #tpu.memory_space<vmem>>, %arg3: memref<1x64xf32, #tpu.memory_space<vmem>>, %arg4: memref<8x8x64xf32, #tpu.memory_space<vmem>>) attributes {dimension_semantics = [#tpu.dimension_semantics<parallel>], iteration_bounds = array<i64: 2>, scalar_prefetch = 0 : i64, scratch_operands = 0 : i64, tpu.core_type = #tpu.core_type<tc>, window_params = [{transform_indices = @transform_0, window_bounds = array<i64: 8, 2, 8, 64>}, {pipeline_mode = #tpu.pipeline_mode<synchronous>, transform_indices = @transform_1, window_bounds = array<i64: 2, 64, 64>}, {pipeline_mode = #tpu.pipeline_mode<synchronous>, transform_indices = @transform_2, window_bounds = array<i64: 1, 64>}, {transform_indices = @transform_3, window_bounds = array<i64: 8, 8, 64>}]} {
    %c0 = arith.constant 0 : index
    %c0_0 = arith.constant 0 : index
    %c0_1 = arith.constant 0 : index
    %c0_2 = arith.constant 0 : index
    %0 = vector.load %arg1[%c0, %c0_0, %c0_1, %c0_2] : memref<8x2x8x64xf32, #tpu.memory_space<vmem>>, vector<8x2x8x64xf32>
    %1 = vector.extract_strided_slice %0 {offsets = [0, 0, 0, 0], sizes = [8, 1, 8, 64], strides = [1, 1, 1, 1]} : vector<8x2x8x64xf32> to vector<8x1x8x64xf32>
    %2 = vector.shape_cast %1 : vector<8x1x8x64xf32> to vector<8x8x64xf32>
    %3 = vector.extract_strided_slice %0 {offsets = [0, 1, 0, 0], sizes = [8, 1, 8, 64], strides = [1, 1, 1, 1]} : vector<8x2x8x64xf32> to vector<8x1x8x64xf32>
    %4 = vector.shape_cast %3 : vector<8x1x8x64xf32> to vector<8x8x64xf32>
    %cst = arith.constant dense<0.000000e+00> : vector<8x8xf32>
    %5 = vector.multi_reduction <add>, %2, %cst [2] : vector<8x8x64xf32> to vector<8x8xf32>
    %6 = vector.shape_cast %5 : vector<8x8xf32> to vector<8x8x1xf32>
    %cst_3 = arith.constant dense<0.000000e+00> : vector<8x8xf32>
    %7 = vector.multi_reduction <add>, %4, %cst_3 [2] : vector<8x8x64xf32> to vector<8x8xf32>
    %8 = vector.shape_cast %7 : vector<8x8xf32> to vector<8x8x1xf32>
    %9 = arith.addf %6, %8 : vector<8x8x1xf32>
    %10 = arith.mulf %2, %2 : vector<8x8x64xf32>
    %cst_4 = arith.constant dense<0.000000e+00> : vector<8x8xf32>
    %11 = vector.multi_reduction <add>, %10, %cst_4 [2] : vector<8x8x64xf32> to vector<8x8xf32>
    %12 = vector.shape_cast %11 : vector<8x8xf32> to vector<8x8x1xf32>
    %13 = arith.mulf %4, %4 : vector<8x8x64xf32>
    %cst_5 = arith.constant dense<0.000000e+00> : vector<8x8xf32>
    %14 = vector.multi_reduction <add>, %13, %cst_5 [2] : vector<8x8x64xf32> to vector<8x8xf32>
    %15 = vector.shape_cast %14 : vector<8x8xf32> to vector<8x8x1xf32>
    %16 = arith.addf %12, %15 : vector<8x8x1xf32>
    %cst_6 = arith.constant 7.812500e-03 : f32
    %17 = vector.broadcast %cst_6 : f32 to vector<8x8x1xf32>
    %18 = arith.mulf %9, %17 : vector<8x8x1xf32>
    %cst_7 = arith.constant 7.812500e-03 : f32
    %19 = vector.broadcast %cst_7 : f32 to vector<8x8x1xf32>
    %20 = arith.mulf %16, %19 : vector<8x8x1xf32>
    %21 = arith.mulf %18, %18 : vector<8x8x1xf32>
    %22 = arith.subf %20, %21 : vector<8x8x1xf32>
    %cst_8 = arith.constant 0.000000e+00 : f32
    %23 = vector.broadcast %cst_8 : f32 to vector<8x8x1xf32>
    %24 = arith.maximumf %22, %23 : vector<8x8x1xf32>
    %cst_9 = arith.constant 9.99999974E-6 : f32
    %25 = vector.broadcast %cst_9 : f32 to vector<8x8x1xf32>
    %26 = arith.addf %24, %25 : vector<8x8x1xf32>
    %27 = math.rsqrt %26 : vector<8x8x1xf32>
    %28 = vector.broadcast %18 : vector<8x8x1xf32> to vector<8x8x64xf32>
    %29 = arith.subf %2, %28 : vector<8x8x64xf32>
    %30 = vector.broadcast %27 : vector<8x8x1xf32> to vector<8x8x64xf32>
    %31 = arith.mulf %29, %30 : vector<8x8x64xf32>
    %32 = vector.broadcast %18 : vector<8x8x1xf32> to vector<8x8x64xf32>
    %33 = arith.subf %4, %32 : vector<8x8x64xf32>
    %34 = vector.broadcast %27 : vector<8x8x1xf32> to vector<8x8x64xf32>
    %35 = arith.mulf %33, %34 : vector<8x8x64xf32>
    %c0_10 = arith.constant 0 : index
    %c0_11 = arith.constant 0 : index
    %c0_12 = arith.constant 0 : index
    %36 = vector.load %arg2[%c0_10, %c0_11, %c0_12] : memref<2x64x64xf32, #tpu.memory_space<vmem>>, vector<1x64x64xf32>
    %37 = vector.shape_cast %36 : vector<1x64x64xf32> to vector<64x64xf32>
    %c1 = arith.constant 1 : index
    %c0_13 = arith.constant 0 : index
    %c0_14 = arith.constant 0 : index
    %38 = vector.load %arg2[%c1, %c0_13, %c0_14] : memref<2x64x64xf32, #tpu.memory_space<vmem>>, vector<1x64x64xf32>
    %39 = vector.shape_cast %38 : vector<1x64x64xf32> to vector<64x64xf32>
    %40 = vector.shape_cast %31 : vector<8x8x64xf32> to vector<64x64xf32>
    %41 = vector.shape_cast %35 : vector<8x8x64xf32> to vector<64x64xf32>
    %cst_15 = arith.constant dense<0.000000e+00> : vector<64x64xf32>
    %42 = tpu.matmul %40, %37, %cst_15 {dimension_numbers = #tpu.dot_dimension_numbers<[1], [0], [0], [1], [0, 0, 1, 1], [], []>} : vector<64x64xf32>, vector<64x64xf32>, vector<64x64xf32> -> vector<64x64xf32>
    %cst_16 = arith.constant dense<0.000000e+00> : vector<64x64xf32>
    %43 = tpu.matmul %41, %39, %cst_16 {dimension_numbers = #tpu.dot_dimension_numbers<[1], [0], [0], [1], [0, 0, 1, 1], [], []>} : vector<64x64xf32>, vector<64x64xf32>, vector<64x64xf32> -> vector<64x64xf32>
    %44 = arith.addf %42, %43 : vector<64x64xf32>
    %c0_17 = arith.constant 0 : index
    %c0_18 = arith.constant 0 : index
    %45 = vector.load %arg3[%c0_17, %c0_18] : memref<1x64xf32, #tpu.memory_space<vmem>>, vector<1x64xf32>
    %46 = vector.broadcast %45 : vector<1x64xf32> to vector<64x64xf32>
    %47 = arith.addf %44, %46 : vector<64x64xf32>
    %48 = vector.shape_cast %47 : vector<64x64xf32> to vector<8x8x64xf32>
    %c0_19 = arith.constant 0 : index
    %c0_20 = arith.constant 0 : index
    %c0_21 = arith.constant 0 : index
    %49 = vector.load %arg4[%c0_19, %c0_20, %c0_21] : memref<8x8x64xf32, #tpu.memory_space<vmem>>, vector<8x8x64xf32>
    tpu.vector_store %arg4[%c0_19, %c0_20, %c0_21], %48 {strides = array<i32>} : memref<8x8x64xf32, #tpu.memory_space<vmem>>, vector<8x8x64xf32>,
    return
  }
  func.func @transform_0(%arg0: i32) -> (i32, i32, i32, i32) {
    %c0_i32 = arith.constant 0 : i32
    %c0_i32_0 = arith.constant 0 : i32
    %c0_i32_1 = arith.constant 0 : i32
    %c0_i32_2 = arith.constant 0 : i32
    return %arg0, %c0_i32, %c0_i32_0, %c0_i32_1 : i32, i32, i32, i32
  }
  func.func @transform_1(%arg0: i32) -> (i32, i32, i32) {
    %c0_i32 = arith.constant 0 : i32
    %c0_i32_0 = arith.constant 0 : i32
    %c0_i32_1 = arith.constant 0 : i32
    %c0_i32_2 = arith.constant 0 : i32
    return %c0_i32, %c0_i32_0, %c0_i32_1 : i32, i32, i32
  }
  func.func @transform_2(%arg0: i32) -> (i32, i32) {
    %c0_i32 = arith.constant 0 : i32
    %c0_i32_0 = arith.constant 0 : i32
    %c0_i32_1 = arith.constant 0 : i32
    return %c0_i32, %c0_i32_0 : i32, i32
  }
  func.func @transform_3(%arg0: i32) -> (i32, i32, i32) {
    %c0_i32 = arith.constant 0 : i32
    %c0_i32_0 = arith.constant 0 : i32
    %c0_i32_1 = arith.constant 0 : i32
    return %arg0, %c0_i32, %c0_i32_0 : i32, i32, i32
  }
}

</mosaic_0001>

<llo_original>
// kernel: patch_merging.1
$region0: #{patch_merging.1}
  #allocation0 [shape = 'u32[]', space=smem, size = 0x4, offset = 0x4, fixed_abs, tag = 'smem constant byte address 0x4 - core index']
  #allocation1 [shape = 'u32[144,128]{1,0:T(1,128)}', space=vmem, size = 0x12000, scoped, tag = 'internal scratch']
  %s0 = inlined_call_operand.vmem [shape: f32[16,2,8,64], index: 0, kind: input, shape index: {}]
  %s1 = inlined_call_operand.vmem [shape: f32[2,64,64], index: 1, kind: input, shape index: {}]
  %s2 = inlined_call_operand.vmem [shape: f32[1,64], index: 2, kind: input, shape index: {}]
  %s3 = inlined_call_operand.hbm [shape: f32[16,8,64], index: 3, kind: output, shape index: {}]
  %s4 = sld [smem:[#allocation0]]
  $region45: #{patch_merging.1} parent=0
    _
  %s6 = ssub.s32 1, %s4
  %s7 = scalar_select 0, %s6, %s4
  $region1: #{patch_merging.1} parent=0
    #allocation2 [shape = 'u8[65536]{0}', space=vmem, size = 0x10000, scoped, tag = 'output window, operand 0']
    #allocation3 [shape = 's32[2]{0}', space=sflag, size = 0x8, scoped, tag = 'scoped memory for patch_merging.1']
    %8 = vsyncpa [#allocation3], 0
    %s9 = scalar_lea.sflag [#allocation3], 1
    %10 = vsyncpa %s9, 0
    loop: start=0, step=1, limit=4
    $region2: #{patch_merging.1} parent=1 // loop_pre_header
      _
    $region3: #{patch_merging.1} parent=1 // loop_header
      %s12 = sphi 0, %s16
      %p13 = scmp.ge.s32.totalorder %s12, 4
      %s22 = sphi 0, %s24
      %s25 = sphi 0, %s22
      %s26 = sphi 0, %s25
      %s42 = sphi 0, %s26
      %s46 = sphi 0, %s46
      %s48 = sphi 0, %s46
      %s49 = sphi 0, %s48
      %s63 = sphi 0, %s49
      %s67 = sphi 0, %s67
      %s69 = sphi 0, %s67
      %s70 = sphi 0, %s69
      %s84 = sphi 0, %s70
      %s90 = sphi 0, %s92
      %s93 = sphi 0, %s90
      %s94 = sphi 0, %s93
      %s110 = sphi 0, %s94
    $region4: #{patch_merging.1} parent=1 // loop_header_branch
      %15 = sbr.rel (%p13) target = $region8
    $region5: #{patch_merging.1} parent=1 // loop_body
      %s17 = ssub.s32 %s12, 1
      %s18 = ssub.s32 %s12, 2
      %s19 = sadd.s32 %s12, 1
      %s20 = ssub.s32 %s12, %s19
      %p21 = scmp.eq.s32.totalorder %s20, 0
      %s23 = sadd.s32 %s22, 1
      %s24 = scalar_select %p21, %s22, %s23
      %p27 = pneg %p21
      %p28 = scmp.eq.s32.totalorder %s12, 1
      %p29 = por %p27, %p28
      %p30 = scmp.ne.s32.totalorder %s22, %s25
      %p31 = scmp.eq.s32.totalorder %s12, 0
      %p32 = por %p30, %p31
      %p33 = scmp.ne.s32.totalorder %s22, %s25
      %p34 = scmp.eq.s32.totalorder %s17, 1
      %p35 = por %p33, %p34
      %p36 = scmp.ne.s32.totalorder %s25, %s26
      %p37 = scmp.eq.s32.totalorder %s17, 0
      %p38 = por %p36, %p37
      %p39 = scmp.ne.s32.totalorder %s25, %s26
      %p40 = scmp.eq.s32.totalorder %s18, 1
      %p41 = por %p39, %p40
      %p43 = scmp.ne.s32.totalorder %s26, %s42
      %p44 = scmp.eq.s32.totalorder %s18, 0
      %p45 = por %p43, %p44
      %s47 = sadd.s32 %s46, 1
      %p50 = scmp.eq.s32.totalorder %s12, 1
      %p51 = scmp.ne.s32.totalorder %s46, %s48
      %p52 = scmp.eq.s32.totalorder %s12, 0
      %p53 = por %p51, %p52
      %p54 = scmp.ne.s32.totalorder %s46, %s48
      %p55 = scmp.eq.s32.totalorder %s17, 1
      %p56 = por %p54, %p55
      %p57 = scmp.ne.s32.totalorder %s48, %s49
      %p58 = scmp.eq.s32.totalorder %s17, 0
      %p59 = por %p57, %p58
      %p60 = scmp.ne.s32.totalorder %s48, %s49
      %p61 = scmp.eq.s32.totalorder %s18, 1
      %p62 = por %p60, %p61
      %p64 = scmp.ne.s32.totalorder %s49, %s63
      %p65 = scmp.eq.s32.totalorder %s18, 0
      %p66 = por %p64, %p65
      %s68 = sadd.s32 %s67, 1
      %p71 = scmp.eq.s32.totalorder %s12, 1
      %p72 = scmp.ne.s32.totalorder %s67, %s69
      %p73 = scmp.eq.s32.totalorder %s12, 0
      %p74 = por %p72, %p73
      %p75 = scmp.ne.s32.totalorder %s67, %s69
      %p76 = scmp.eq.s32.totalorder %s17, 1
      %p77 = por %p75, %p76
      %p78 = scmp.ne.s32.totalorder %s69, %s70
      %p79 = scmp.eq.s32.totalorder %s17, 0
      %p80 = por %p78, %p79
      %p81 = scmp.ne.s32.totalorder %s69, %s70
      %p82 = scmp.eq.s32.totalorder %s18, 1
      %p83 = por %p81, %p82
      %p85 = scmp.ne.s32.totalorder %s70, %s84
      %p86 = scmp.eq.s32.totalorder %s18, 0
      %p87 = por %p85, %p86
      %s88 = ssub.s32 %s12, %s19
      %p89 = scmp.eq.s32.totalorder %s88, 0
      %s91 = sadd.s32 %s90, 1
      %s92 = scalar_select %p89, %s90, %s91
      %p95 = pneg %p89
      %p96 = scmp.eq.s32.totalorder %s12, 1
      %p97 = por %p95, %p96
      %p98 = scmp.ne.s32.totalorder %s90, %s93
      %p99 = scmp.eq.s32.totalorder %s12, 0
      %p100 = por %p98, %p99
      %p101 = scmp.ne.s32.totalorder %s90, %s93
      %p102 = scmp.eq.s32.totalorder %s17, 1
      %p103 = por %p101, %p102
      %p104 = scmp.ne.s32.totalorder %s93, %s94
      %p105 = scmp.eq.s32.totalorder %s17, 0
      %p106 = por %p104, %p105
      %p107 = scmp.ne.s32.totalorder %s93, %s94
      %p108 = scmp.eq.s32.totalorder %s18, 1
      %p109 = por %p107, %p108
      %p111 = scmp.ne.s32.totalorder %s94, %s110
      %p112 = scmp.eq.s32.totalorder %s18, 0
      %p113 = por %p111, %p112
      %p114 = scmp.le.s32.totalorder 1, %s12
      %p115 = scmp.lt.s32.totalorder %s12, 3
      %p116 = pnand %p114, %p115
      %p117 = pneg %p116
      // Predicated region
      $region9: #{patch_merging.1} parent=5 // pred_check
        _
      $region10: #{patch_merging.1} parent=5 // pred_check_branch
        %119 = sbr.rel (%p116) target = $region12
      $region11: #{patch_merging.1} parent=5 // pred_region
        %s120 = ssub.s32 %s12, 1
        // Predicated region
        $region13: #{patch_merging.1} parent=11 // pred_check
          %p121 = pneg %p59
        $region14: #{patch_merging.1} parent=11 // pred_check_branch
          %123 = sbr.rel (%p121) target = $region16
        $region15: #{patch_merging.1} parent=11 // pred_region
          _
        $region16: #{patch_merging.1} parent=11 // pred_fallthru
          _
        // Predicated region
        $region17: #{patch_merging.1} parent=11 // pred_check
          %p124 = pneg %p80
        $region18: #{patch_merging.1} parent=11 // pred_check_branch
          %126 = sbr.rel (%p124) target = $region20
        $region19: #{patch_merging.1} parent=11 // pred_region
          _
        $region20: #{patch_merging.1} parent=11 // pred_fallthru
          _
      $region12: #{patch_merging.1} parent=5 // pred_fallthru
        _
      %p127 = scmp.lt.s32.totalorder %s12, 2
      // Predicated region
      $region21: #{patch_merging.1} parent=5 // pred_check
        %p128 = pneg %p127
      $region22: #{patch_merging.1} parent=5 // pred_check_branch
        %130 = sbr.rel (%p128) target = $region24
      $region23: #{patch_merging.1} parent=5 // pred_region
        // Predicated region
        $region25: #{patch_merging.1} parent=23 // pred_check
          %p131 = pneg %p32
        $region26: #{patch_merging.1} parent=23 // pred_check_branch
          %133 = sbr.rel (%p131) target = $region28
        $region27: #{patch_merging.1} parent=23 // pred_region
          %s134 = smul.u32 8, %s12
          %p135 = scmp.lt.s32.totalorder %s134, 15
          %s136 = scalar_select %p135, %s134, 15
          %s137 = smul.addr %s136, 2
          %s138 = smul.addr %s137, 8
          %s139 = scalar_lea.vmem %s0, %s138
          %s140 = smul.u32 8, %s12
        $region28: #{patch_merging.1} parent=23 // pred_fallthru
          _
      $region24: #{patch_merging.1} parent=5 // pred_fallthru
        _
      %p141 = scmp.le.s32.totalorder 1, %s12
      %p142 = scmp.lt.s32.totalorder %s12, 3
      %p143 = pnand %p141, %p142
      %p144 = pneg %p143
      // Predicated region
      $region29: #{patch_merging.1} parent=5 // pred_check
        _
      $region30: #{patch_merging.1} parent=5 // pred_check_branch
        %146 = sbr.rel (%p143) target = $region32
      $region31: #{patch_merging.1} parent=5 // pred_region
        %s147 = ssub.s32 %s12, 1
        %s148 = smul.u32 8, %s17
        %p149 = scmp.lt.s32.totalorder %s148, 15
        %s150 = scalar_select %p149, %s148, 15
        %s151 = smul.addr %s150, 2
        %s152 = smul.addr %s151, 8
        %s153 = scalar_lea.vmem %s0, %s152
        %p154 = pneg %p38
        %p155 = pneg %p35
        %p156 = pneg %p59
        %p157 = pneg %p56
        %p158 = pneg %p80
        %p159 = pneg %p77
        %p160 = pneg %p106
        %p161 = pneg %p103
        %s162 = sand.u32 %s93, 1
        %s163 = scalar_lea.sflag [#allocation3], %s162
        %s164 = sand.u32 %s93, 1
        %s165 = smul.addr %s164, 64
        %s166 = scalar_lea.vmem [#allocation2], %s165
        %s167 = smul.u32 8, %s17
        %p168 = scmp.lt.s32.totalorder %s167, 15
        %s169 = scalar_select %p168, %s167, 15
        %s170 = smul.addr %s169, 2
        %s171 = smul.addr %s170, 8
        %s172 = scalar_lea.vmem %s0, %s171
        %s173 = smul.u32 8, %s17
        %s174 = smul.u32 8, %s17
        %v175 = vld [vmem:[%s172] sm:$0xff]
        %v176 = vld [vmem:[%s172 + $0x8] sm:$0xff]
        %v177 = vld [vmem:[%s172 + $0x10] sm:$0xff]
        %v178 = vld [vmem:[%s172 + $0x18] sm:$0xff]
        %v179 = vld [vmem:[%s172 + $0x20] sm:$0xff]
        %v180 = vld [vmem:[%s172 + $0x28] sm:$0xff]
        %v181 = vld [vmem:[%s172 + $0x30] sm:$0xff]
        %v182 = vld [vmem:[%s172 + $0x38] sm:$0xff]
        %v183 = vld [vmem:[%s172 + $0x40] sm:$0xff]
        %v184 = vld [vmem:[%s172 + $0x48] sm:$0xff]
        %v185 = vld [vmem:[%s172 + $0x50] sm:$0xff]
        %v186 = vld [vmem:[%s172 + $0x58] sm:$0xff]
        %v187 = vld [vmem:[%s172 + $0x60] sm:$0xff]
        %v188 = vld [vmem:[%s172 + $0x68] sm:$0xff]
        %v189 = vld [vmem:[%s172 + $0x70] sm:$0xff]
        %v190 = vld [vmem:[%s172 + $0x78] sm:$0xff]
        %vm191 = vcmask 523264
        %v192 = vsel %vm191, %v175, 0.0
        %193 = vadd.xlane.f32.xlu0 %v192
        %v194 = vpop.xlane.xlu0 %193
        %v195 = vsel %vm191, %v177, 0.0
        %196 = vadd.xlane.f32.xlu0 %v195
        %v197 = vpop.xlane.xlu0 %196
        %v198 = vsel %vm191, %v179, 0.0
        %199 = vadd.xlane.f32.xlu0 %v198
        %v200 = vpop.xlane.xlu0 %199
        %v201 = vsel %vm191, %v181, 0.0
        %202 = vadd.xlane.f32.xlu0 %v201
        %v203 = vpop.xlane.xlu0 %202
        %v204 = vsel %vm191, %v183, 0.0
        %205 = vadd.xlane.f32.xlu0 %v204
        %v206 = vpop.xlane.xlu0 %205
        %v207 = vsel %vm191, %v185, 0.0
        %208 = vadd.xlane.f32.xlu0 %v207
        %v209 = vpop.xlane.xlu0 %208
        %v210 = vsel %vm191, %v187, 0.0
        %211 = vadd.xlane.f32.xlu0 %v210
        %v212 = vpop.xlane.xlu0 %211
        %v213 = vsel %vm191, %v189, 0.0
        %214 = vadd.xlane.f32.xlu0 %v213
        %v215 = vpop.xlane.xlu0 %214
        %v216 = vsel %vm191, %v176, 0.0
        %217 = vadd.xlane.f32.xlu0 %v216
        %v218 = vpop.xlane.xlu0 %217
        %v219 = vsel %vm191, %v178, 0.0
        %220 = vadd.xlane.f32.xlu0 %v219
        %v221 = vpop.xlane.xlu0 %220
        %v222 = vsel %vm191, %v180, 0.0
        %223 = vadd.xlane.f32.xlu0 %v222
        %v224 = vpop.xlane.xlu0 %223
        %v225 = vsel %vm191, %v182, 0.0
        %226 = vadd.xlane.f32.xlu0 %v225
        %v227 = vpop.xlane.xlu0 %226
        %v228 = vsel %vm191, %v184, 0.0
        %229 = vadd.xlane.f32.xlu0 %v228
        %v230 = vpop.xlane.xlu0 %229
        %v231 = vsel %vm191, %v186, 0.0
        %232 = vadd.xlane.f32.xlu0 %v231
        %v233 = vpop.xlane.xlu0 %232
        %v234 = vsel %vm191, %v188, 0.0
        %235 = vadd.xlane.f32.xlu0 %v234
        %v236 = vpop.xlane.xlu0 %235
        %v237 = vsel %vm191, %v190, 0.0
        %238 = vadd.xlane.f32.xlu0 %v237
        %v239 = vpop.xlane.xlu0 %238
        %v240 = vadd.f32 %v194, %v218
        %v241 = vadd.f32 %v197, %v221
        %v242 = vadd.f32 %v200, %v224
        %v243 = vadd.f32 %v203, %v227
        %v244 = vadd.f32 %v206, %v230
        %v245 = vadd.f32 %v209, %v233
        %v246 = vadd.f32 %v212, %v236
        %v247 = vadd.f32 %v215, %v239
        %v248 = vmul.f32 %v175, %v175
        %v249 = vmul.f32 %v177, %v177
        %v250 = vmul.f32 %v179, %v179
        %v251 = vmul.f32 %v181, %v181
        %v252 = vmul.f32 %v183, %v183
        %v253 = vmul.f32 %v185, %v185
        %v254 = vmul.f32 %v187, %v187
        %v255 = vmul.f32 %v189, %v189
        %v256 = vsel %vm191, %v248, 0.0
        %257 = vadd.xlane.f32.xlu0 %v256
        %v258 = vpop.xlane.xlu0 %257
        %v259 = vsel %vm191, %v249, 0.0
        %260 = vadd.xlane.f32.xlu0 %v259
        %v261 = vpop.xlane.xlu0 %260
        %v262 = vsel %vm191, %v250, 0.0
        %263 = vadd.xlane.f32.xlu0 %v262
        %v264 = vpop.xlane.xlu0 %263
        %v265 = vsel %vm191, %v251, 0.0
        %266 = vadd.xlane.f32.xlu0 %v265
        %v267 = vpop.xlane.xlu0 %266
        %v268 = vsel %vm191, %v252, 0.0
        %269 = vadd.xlane.f32.xlu0 %v268
        %v270 = vpop.xlane.xlu0 %269
        %v271 = vsel %vm191, %v253, 0.0
        %272 = vadd.xlane.f32.xlu0 %v271
        %v273 = vpop.xlane.xlu0 %272
        %v274 = vsel %vm191, %v254, 0.0
        %275 = vadd.xlane.f32.xlu0 %v274
        %v276 = vpop.xlane.xlu0 %275
        %v277 = vsel %vm191, %v255, 0.0
        %278 = vadd.xlane.f32.xlu0 %v277
        %v279 = vpop.xlane.xlu0 %278
        %v280 = vmul.f32 %v176, %v176
        %v281 = vmul.f32 %v178, %v178
        %v282 = vmul.f32 %v180, %v180
        %v283 = vmul.f32 %v182, %v182
        %v284 = vmul.f32 %v184, %v184
        %v285 = vmul.f32 %v186, %v186
        %v286 = vmul.f32 %v188, %v188
        %v287 = vmul.f32 %v190, %v190
        %v288 = vsel %vm191, %v280, 0.0
        %289 = vadd.xlane.f32.xlu0 %v288
        %v290 = vpop.xlane.xlu0 %289
        %v291 = vsel %vm191, %v281, 0.0
        %292 = vadd.xlane.f32.xlu0 %v291
        %v293 = vpop.xlane.xlu0 %292
        %v294 = vsel %vm191, %v282, 0.0
        %295 = vadd.xlane.f32.xlu0 %v294
        %v296 = vpop.xlane.xlu0 %295
        %v297 = vsel %vm191, %v283, 0.0
        %298 = vadd.xlane.f32.xlu0 %v297
        %v299 = vpop.xlane.xlu0 %298
        %v300 = vsel %vm191, %v284, 0.0
        %301 = vadd.xlane.f32.xlu0 %v300
        %v302 = vpop.xlane.xlu0 %301
        %v303 = vsel %vm191, %v285, 0.0
        %304 = vadd.xlane.f32.xlu0 %v303
        %v305 = vpop.xlane.xlu0 %304
        %v306 = vsel %vm191, %v286, 0.0
        %307 = vadd.xlane.f32.xlu0 %v306
        %v308 = vpop.xlane.xlu0 %307
        %v309 = vsel %vm191, %v287, 0.0
        %310 = vadd.xlane.f32.xlu0 %v309
        %v311 = vpop.xlane.xlu0 %310
        %v312 = vadd.f32 %v258, %v290
        %v313 = vadd.f32 %v261, %v293
        %v314 = vadd.f32 %v264, %v296
        %v315 = vadd.f32 %v267, %v299
        %v316 = vadd.f32 %v270, %v302
        %v317 = vadd.f32 %v273, %v305
        %v318 = vadd.f32 %v276, %v308
        %v319 = vadd.f32 %v279, %v311
        %v320 = vmul.f32 %v240, 0.0078125
        %v321 = vmul.f32 %v241, 0.0078125
        %v322 = vmul.f32 %v242, 0.0078125
        %v323 = vmul.f32 %v243, 0.0078125
        %v324 = vmul.f32 %v244, 0.0078125
        %v325 = vmul.f32 %v245, 0.0078125
        %v326 = vmul.f32 %v246, 0.0078125
        %v327 = vmul.f32 %v247, 0.0078125
        %v328 = vmul.f32 %v312, 0.0078125
        %v329 = vmul.f32 %v313, 0.0078125
        %v330 = vmul.f32 %v314, 0.0078125
        %v331 = vmul.f32 %v315, 0.0078125
        %v332 = vmul.f32 %v316, 0.0078125
        %v333 = vmul.f32 %v317, 0.0078125
        %v334 = vmul.f32 %v318, 0.0078125
        %v335 = vmul.f32 %v319, 0.0078125
        %v336 = vmul.f32 %v320, %v320
        %v337 = vmul.f32 %v321, %v321
        %v338 = vmul.f32 %v322, %v322
        %v339 = vmul.f32 %v323, %v323
        %v340 = vmul.f32 %v324, %v324
        %v341 = vmul.f32 %v325, %v325
        %v342 = vmul.f32 %v326, %v326
        %v343 = vmul.f32 %v327, %v327
        %v344 = vsub.f32 %v328, %v336
        %v345 = vsub.f32 %v329, %v337
        %v346 = vsub.f32 %v330, %v338
        %v347 = vsub.f32 %v331, %v339
        %v348 = vsub.f32 %v332, %v340
        %v349 = vsub.f32 %v333, %v341
        %v350 = vsub.f32 %v334, %v342
        %v351 = vsub.f32 %v335, %v343
        %v352 = vmax.f32 %v344, 0.0
        %v353 = vmax.f32 %v345, 0.0
        %v354 = vmax.f32 %v346, 0.0
        %v355 = vmax.f32 %v347, 0.0
        %v356 = vmax.f32 %v348, 0.0
        %v357 = vmax.f32 %v349, 0.0
        %v358 = vmax.f32 %v350, 0.0
        %v359 = vmax.f32 %v351, 0.0
        %v360 = vadd.f32 %v352, 1e-05
        %v361 = vadd.f32 %v353, 1e-05
        %v362 = vadd.f32 %v354, 1e-05
        %v363 = vadd.f32 %v355, 1e-05
        %v364 = vadd.f32 %v356, 1e-05
        %v365 = vadd.f32 %v357, 1e-05
        %v366 = vadd.f32 %v358, 1e-05
        %v367 = vadd.f32 %v359, 1e-05
        %v368 = vrsqrt.pop %v360
        %v369 = vrsqrt.pop %v361
        %v370 = vrsqrt.pop %v362
        %v371 = vrsqrt.pop %v363
        %v372 = vrsqrt.pop %v364
        %v373 = vrsqrt.pop %v365
        %v374 = vrsqrt.pop %v366
        %v375 = vrsqrt.pop %v367
        %v376 = vsub.f32 %v175, %v320
        %v377 = vsub.f32 %v177, %v321
        %v378 = vsub.f32 %v179, %v322
        %v379 = vsub.f32 %v181, %v323
        %v380 = vsub.f32 %v183, %v324
        %v381 = vsub.f32 %v185, %v325
        %v382 = vsub.f32 %v187, %v326
        %v383 = vsub.f32 %v189, %v327
        %v384 = vmul.f32 %v376, %v368
        %v385 = vmul.f32 %v377, %v369
        %v386 = vmul.f32 %v378, %v370
        %v387 = vmul.f32 %v379, %v371
        %v388 = vmul.f32 %v380, %v372
        %v389 = vmul.f32 %v381, %v373
        %v390 = vmul.f32 %v382, %v374
        %v391 = vmul.f32 %v383, %v375
        %v392 = vsub.f32 %v176, %v320
        %v393 = vsub.f32 %v178, %v321
        %v394 = vsub.f32 %v180, %v322
        %v395 = vsub.f32 %v182, %v323
        %v396 = vsub.f32 %v184, %v324
        %v397 = vsub.f32 %v186, %v325
        %v398 = vsub.f32 %v188, %v326
        %v399 = vsub.f32 %v190, %v327
        %v400 = vmul.f32 %v392, %v368
        %v401 = vmul.f32 %v393, %v369
        %v402 = vmul.f32 %v394, %v370
        %v403 = vmul.f32 %v395, %v371
        %v404 = vmul.f32 %v396, %v372
        %v405 = vmul.f32 %v397, %v373
        %v406 = vmul.f32 %v398, %v374
        %v407 = vmul.f32 %v399, %v375
        %v408 = vld [vmem:[%s1] sm:$0xff]
        %v409 = vld [vmem:[%s1 + $0x8] sm:$0xff]
        %v410 = vld [vmem:[%s1 + $0x10] sm:$0xff]
        %v411 = vld [vmem:[%s1 + $0x18] sm:$0xff]
        %v412 = vld [vmem:[%s1 + $0x20] sm:$0xff]
        %v413 = vld [vmem:[%s1 + $0x28] sm:$0xff]
        %v414 = vld [vmem:[%s1 + $0x30] sm:$0xff]
        %v415 = vld [vmem:[%s1 + $0x38] sm:$0xff]
        %s416 = scalar_lea.vmem %s1, 64
        %v417 = vld [vmem:[%s416] sm:$0xff]
        %v418 = vld [vmem:[%s416 + $0x8] sm:$0xff]
        %v419 = vld [vmem:[%s416 + $0x10] sm:$0xff]
        %v420 = vld [vmem:[%s416 + $0x18] sm:$0xff]
        %v421 = vld [vmem:[%s416 + $0x20] sm:$0xff]
        %v422 = vld [vmem:[%s416 + $0x28] sm:$0xff]
        %v423 = vld [vmem:[%s416 + $0x30] sm:$0xff]
        %v424 = vld [vmem:[%s416 + $0x38] sm:$0xff]
        %v426 = vsel %vm191, %v400, 0
        %v429 = vsel %vm191, %v401, 0
        %v432 = vsel %vm191, %v402, 0
        %v435 = vsel %vm191, %v403, 0
        %v438 = vsel %vm191, %v404, 0
        %v441 = vsel %vm191, %v405, 0
        %v444 = vsel %vm191, %v406, 0
        %v447 = vsel %vm191, %v407, 0
        %449 = vmatprep.subr.mxu0 0.0
        %450 = vmatpush1.msra.mxu0 0.0
        %451 = vmatprep.subr.mxu0 0.0
        %452 = vmatpush1.msra.mxu0 0.0
        %453 = vmatprep.subr.mxu0 0.0
        %454 = vmatpush1.msra.mxu0 0.0
        %455 = vmatprep.subr.mxu0 0.0
        %456 = vmatpush1.msra.mxu0 0.0
        %457 = vmatprep.subr.mxu0 0.0
        %458 = vmatpush1.msra.mxu0 0.0
        %459 = vmatprep.subr.mxu0 0.0
        %460 = vmatpush1.msra.mxu0 0.0
        %461 = vmatprep.subr.mxu0 0.0
        %462 = vmatpush1.msra.mxu0 0.0
        %463 = vmatprep.subr.mxu0 0.0
        %464 = vmatpush1.msra.mxu0 0.0
        %465 = vmatprep.subr.mxu0 0.0
        %466 = vmatpush1.msra.mxu0 %v424
        %467 = vmatprep.subr.mxu0 0.0
        %468 = vmatpush1.msra.mxu0 %v423
        %469 = vmatprep.subr.mxu0 0.0
        %470 = vmatpush1.msra.mxu0 %v422
        %471 = vmatprep.subr.mxu0 0.0
        %472 = vmatpush1.msra.mxu0 %v421
        %473 = vmatprep.subr.mxu0 0.0
        %474 = vmatpush1.msra.mxu0 %v420
        %475 = vmatprep.subr.mxu0 0.0
        %476 = vmatpush1.msra.mxu0 %v419
        %477 = vmatprep.subr.mxu0 0.0
        %478 = vmatpush1.msra.mxu0 %v418
        %479 = vmatprep.subr.mxu0 0.0
        %480 = vmatpush1.msra.mxu0 %v417
        %481 = vmatprep.subr.mxu0 0.0
        %482 = vmatpush2.msra.mxu0 0.0
        %483 = vmatprep.subr.mxu0 0.0
        %484 = vmatpush2.msra.mxu0 0.0
        %485 = vmatprep.subr.mxu0 0.0
        %486 = vmatpush2.msra.mxu0 0.0
        %487 = vmatprep.subr.mxu0 0.0
        %488 = vmatpush2.msra.mxu0 0.0
        %489 = vmatprep.subr.mxu0 0.0
        %490 = vmatpush2.msra.mxu0 0.0
        %491 = vmatprep.subr.mxu0 0.0
        %492 = vmatpush2.msra.mxu0 0.0
        %493 = vmatprep.subr.mxu0 0.0
        %494 = vmatpush2.msra.mxu0 0.0
        %495 = vmatprep.subr.mxu0 0.0
        %496 = vmatpush2.msra.mxu0 0.0
        %497 = vmatprep.subr.mxu0 0.0
        %498 = vmatpush2.msra.mxu0 0.0
        %499 = vmatprep.subr.mxu0 0.0
        %500 = vmatpush2.msra.mxu0 0.0
        %501 = vmatprep.subr.mxu0 0.0
        %502 = vmatpush2.msra.mxu0 0.0
        %503 = vmatprep.subr.mxu0 0.0
        %504 = vmatpush2.msra.mxu0 0.0
        %505 = vmatprep.subr.mxu0 0.0
        %506 = vmatpush2.msra.mxu0 0.0
        %507 = vmatprep.subr.mxu0 0.0
        %508 = vmatpush2.msra.mxu0 0.0
        %509 = vmatprep.subr.mxu0 0.0
        %510 = vmatpush2.msra.mxu0 0.0
        %511 = vmatprep.subr.mxu0 0.0
        %512 = vmatpush2.msra.mxu0 0.0
        %513 = vmatprep.mubr.f32.mxu0 0.0
        %514 = vmatmul.mubr.f32.gmra.mxu0 %v426
        %v515 = vpop.f32.mrf.mxu0
        %v516 = vadd.f32 0.0, %v515
        %v517 = vpop.f32.mrf.mxu0
        %518 = vmatprep.mubr.f32.mxu0 0.0
        %519 = vmatmul.mubr.f32.gmra.mxu0 %v429
        %v520 = vpop.f32.mrf.mxu0
        %v521 = vadd.f32 0.0, %v520
        %v522 = vpop.f32.mrf.mxu0
        %523 = vmatprep.mubr.f32.mxu0 0.0
        %524 = vmatmul.mubr.f32.gmra.mxu0 %v432
        %v525 = vpop.f32.mrf.mxu0
        %v526 = vadd.f32 0.0, %v525
        %v527 = vpop.f32.mrf.mxu0
        %528 = vmatprep.mubr.f32.mxu0 0.0
        %529 = vmatmul.mubr.f32.gmra.mxu0 %v435
        %v530 = vpop.f32.mrf.mxu0
        %v531 = vadd.f32 0.0, %v530
        %v532 = vpop.f32.mrf.mxu0
        %533 = vmatprep.mubr.f32.mxu0 0.0
        %534 = vmatmul.mubr.f32.gmra.mxu0 %v438
        %v535 = vpop.f32.mrf.mxu0
        %v536 = vadd.f32 0.0, %v535
        %v537 = vpop.f32.mrf.mxu0
        %538 = vmatprep.mubr.f32.mxu0 0.0
        %539 = vmatmul.mubr.f32.gmra.mxu0 %v441
        %v540 = vpop.f32.mrf.mxu0
        %v541 = vadd.f32 0.0, %v540
        %v542 = vpop.f32.mrf.mxu0
        %543 = vmatprep.mubr.f32.mxu0 0.0
        %544 = vmatmul.mubr.f32.gmra.mxu0 %v444
        %v545 = vpop.f32.mrf.mxu0
        %v546 = vadd.f32 0.0, %v545
        %v547 = vpop.f32.mrf.mxu0
        %548 = vmatprep.mubr.f32.mxu0 0.0
        %549 = vmatmul.mubr.f32.gmra.mxu0 %v447
        %v550 = vpop.f32.mrf.mxu0
        %v551 = vadd.f32 0.0, %v550
        %v552 = vpop.f32.mrf.mxu0
        %553 = vdwg.mxu0
        %v555 = vsel %vm191, %v384, 0
        %v558 = vsel %vm191, %v385, 0
        %v561 = vsel %vm191, %v386, 0
        %v564 = vsel %vm191, %v387, 0
        %v567 = vsel %vm191, %v388, 0
        %v570 = vsel %vm191, %v389, 0
        %v573 = vsel %vm191, %v390, 0
        %v576 = vsel %vm191, %v391, 0
        %578 = vmatprep.subr.mxu0 0.0
        %579 = vmatpush1.msra.mxu0 0.0
        %580 = vmatprep.subr.mxu0 0.0
        %581 = vmatpush1.msra.mxu0 0.0
        %582 = vmatprep.subr.mxu0 0.0
        %583 = vmatpush1.msra.mxu0 0.0
        %584 = vmatprep.subr.mxu0 0.0
        %585 = vmatpush1.msra.mxu0 0.0
        %586 = vmatprep.subr.mxu0 0.0
        %587 = vmatpush1.msra.mxu0 0.0
        %588 = vmatprep.subr.mxu0 0.0
        %589 = vmatpush1.msra.mxu0 0.0
        %590 = vmatprep.subr.mxu0 0.0
        %591 = vmatpush1.msra.mxu0 0.0
        %592 = vmatprep.subr.mxu0 0.0
        %593 = vmatpush1.msra.mxu0 0.0
        %594 = vmatprep.subr.mxu0 0.0
        %595 = vmatpush1.msra.mxu0 %v415
        %596 = vmatprep.subr.mxu0 0.0
        %597 = vmatpush1.msra.mxu0 %v414
        %598 = vmatprep.subr.mxu0 0.0
        %599 = vmatpush1.msra.mxu0 %v413
        %600 = vmatprep.subr.mxu0 0.0
        %601 = vmatpush1.msra.mxu0 %v412
        %602 = vmatprep.subr.mxu0 0.0
        %603 = vmatpush1.msra.mxu0 %v411
        %604 = vmatprep.subr.mxu0 0.0
        %605 = vmatpush1.msra.mxu0 %v410
        %606 = vmatprep.subr.mxu0 0.0
        %607 = vmatpush1.msra.mxu0 %v409
        %608 = vmatprep.subr.mxu0 0.0
        %609 = vmatpush1.msra.mxu0 %v408
        %610 = vmatprep.subr.mxu0 0.0
        %611 = vmatpush2.msra.mxu0 0.0
        %612 = vmatprep.subr.mxu0 0.0
        %613 = vmatpush2.msra.mxu0 0.0
        %614 = vmatprep.subr.mxu0 0.0
        %615 = vmatpush2.msra.mxu0 0.0
        %616 = vmatprep.subr.mxu0 0.0
        %617 = vmatpush2.msra.mxu0 0.0
        %618 = vmatprep.subr.mxu0 0.0
        %619 = vmatpush2.msra.mxu0 0.0
        %620 = vmatprep.subr.mxu0 0.0
        %621 = vmatpush2.msra.mxu0 0.0
        %622 = vmatprep.subr.mxu0 0.0
        %623 = vmatpush2.msra.mxu0 0.0
        %624 = vmatprep.subr.mxu0 0.0
        %625 = vmatpush2.msra.mxu0 0.0
        %626 = vmatprep.subr.mxu0 0.0
        %627 = vmatpush2.msra.mxu0 0.0
        %628 = vmatprep.subr.mxu0 0.0
        %629 = vmatpush2.msra.mxu0 0.0
        %630 = vmatprep.subr.mxu0 0.0
        %631 = vmatpush2.msra.mxu0 0.0
        %632 = vmatprep.subr.mxu0 0.0
        %633 = vmatpush2.msra.mxu0 0.0
        %634 = vmatprep.subr.mxu0 0.0
        %635 = vmatpush2.msra.mxu0 0.0
        %636 = vmatprep.subr.mxu0 0.0
        %637 = vmatpush2.msra.mxu0 0.0
        %638 = vmatprep.subr.mxu0 0.0
        %639 = vmatpush2.msra.mxu0 0.0
        %640 = vmatprep.subr.mxu0 0.0
        %641 = vmatpush2.msra.mxu0 0.0
        %642 = vmatprep.mubr.f32.mxu0 0.0
        %643 = vmatmul.mubr.f32.gmra.mxu0 %v555
        %v644 = vpop.f32.mrf.mxu0
        %v645 = vadd.f32 %v516, %v644
        %v646 = vpop.f32.mrf.mxu0
        %647 = vmatprep.mubr.f32.mxu0 0.0
        %648 = vmatmul.mubr.f32.gmra.mxu0 %v558
        %v649 = vpop.f32.mrf.mxu0
        %v650 = vadd.f32 %v521, %v649
        %v651 = vpop.f32.mrf.mxu0
        %652 = vmatprep.mubr.f32.mxu0 0.0
        %653 = vmatmul.mubr.f32.gmra.mxu0 %v561
        %v654 = vpop.f32.mrf.mxu0
        %v655 = vadd.f32 %v526, %v654
        %v656 = vpop.f32.mrf.mxu0
        %657 = vmatprep.mubr.f32.mxu0 0.0
        %658 = vmatmul.mubr.f32.gmra.mxu0 %v564
        %v659 = vpop.f32.mrf.mxu0
        %v660 = vadd.f32 %v531, %v659
        %v661 = vpop.f32.mrf.mxu0
        %662 = vmatprep.mubr.f32.mxu0 0.0
        %663 = vmatmul.mubr.f32.gmra.mxu0 %v567
        %v664 = vpop.f32.mrf.mxu0
        %v665 = vadd.f32 %v536, %v664
        %v666 = vpop.f32.mrf.mxu0
        %667 = vmatprep.mubr.f32.mxu0 0.0
        %668 = vmatmul.mubr.f32.gmra.mxu0 %v570
        %v669 = vpop.f32.mrf.mxu0
        %v670 = vadd.f32 %v541, %v669
        %v671 = vpop.f32.mrf.mxu0
        %672 = vmatprep.mubr.f32.mxu0 0.0
        %673 = vmatmul.mubr.f32.gmra.mxu0 %v573
        %v674 = vpop.f32.mrf.mxu0
        %v675 = vadd.f32 %v546, %v674
        %v676 = vpop.f32.mrf.mxu0
        %677 = vmatprep.mubr.f32.mxu0 0.0
        %678 = vmatmul.mubr.f32.gmra.mxu0 %v576
        %v679 = vpop.f32.mrf.mxu0
        %v680 = vadd.f32 %v551, %v679
        %v681 = vpop.f32.mrf.mxu0
        %682 = vdwg.mxu0
        %v683 = vld [vmem:[%s2] sm:$0x1]
        %v685 = vlaneseq
        %v686 = vshrl.u32 %v685, 7
        %v687 = vsub.s32 0, %v686
        %v688 = vrot.slane %v683, %v687
        %v690 = vadd.f32 %v645, %v688
        %v691 = vadd.f32 %v650, %v688
        %v692 = vadd.f32 %v655, %v688
        %v693 = vadd.f32 %v660, %v688
        %v694 = vadd.f32 %v665, %v688
        %v695 = vadd.f32 %v670, %v688
        %v696 = vadd.f32 %v675, %v688
        %v697 = vadd.f32 %v680, %v688
        %698 = vst.msk [vmem:[%s166] sm:$0xff] %vm191, %v690
        %699 = vst.msk [vmem:[%s166 + $0x8] sm:$0xff] %vm191, %v691
        %700 = vst.msk [vmem:[%s166 + $0x10] sm:$0xff] %vm191, %v692
        %701 = vst.msk [vmem:[%s166 + $0x18] sm:$0xff] %vm191, %v693
        %702 = vst.msk [vmem:[%s166 + $0x20] sm:$0xff] %vm191, %v694
        %703 = vst.msk [vmem:[%s166 + $0x28] sm:$0xff] %vm191, %v695
        %704 = vst.msk [vmem:[%s166 + $0x30] sm:$0xff] %vm191, %v696
        %705 = vst.msk [vmem:[%s166 + $0x38] sm:$0xff] %vm191, %v697
        %s706 = sand.u32 %s93, 1
        %s707 = scalar_lea.sflag [#allocation3], %s706
        %s708 = sand.u32 %s93, 1
        %s709 = smul.addr %s708, 64
        %s710 = scalar_lea.vmem [#allocation2], %s709
        // Predicated region
        $region33: #{patch_merging.1} parent=31 // pred_check
          %p711 = pneg %p103
        $region34: #{patch_merging.1} parent=31 // pred_check_branch
          %713 = sbr.rel (%p711) target = $region36
        $region35: #{patch_merging.1} parent=31 // pred_region
          %s714 = smul.u32 8, %s17
          %s716 = ssub.s32 1024, 1024
          %717 = vsyncadd %s707, %s716
          %s718 = smul.addr %s714, 128
          %s719 = scalar_lea.hbm %s3, %s718
          %s720 = sshll.u32 %s710, 4
          %s721 = int_to_ptr.vmem [resolvable:$true] %s720
          %726 = dma.vmem_to_hbm [thread:$0]  %s721, 1024, %s719, %s707, 128, 128, 8
        $region36: #{patch_merging.1} parent=31 // pred_fallthru
          _
      $region32: #{patch_merging.1} parent=5 // pred_fallthru
        _
      %p727 = scmp.le.s32.totalorder 2, %s12
      // Predicated region
      $region37: #{patch_merging.1} parent=5 // pred_check
        %p728 = pneg %p727
      $region38: #{patch_merging.1} parent=5 // pred_check_branch
        %730 = sbr.rel (%p728) target = $region40
      $region39: #{patch_merging.1} parent=5 // pred_region
        %s731 = ssub.s32 %s12, 2
        // Predicated region
        $region41: #{patch_merging.1} parent=39 // pred_check
          %p732 = pneg %p109
        $region42: #{patch_merging.1} parent=39 // pred_check_branch
          %734 = sbr.rel (%p732) target = $region44
        $region43: #{patch_merging.1} parent=39 // pred_region
          %s735 = sand.u32 %s94, 1
          %s736 = scalar_lea.sflag [#allocation3], %s735
          %s737 = sand.u32 %s94, 1
          %s738 = smul.addr %s737, 64
          %s739 = scalar_lea.vmem [#allocation2], %s738
          %740 = dma.done %s736, 1024
        $region44: #{patch_merging.1} parent=39 // pred_fallthru
          _
      $region40: #{patch_merging.1} parent=5 // pred_fallthru
        _
    $region6: #{patch_merging.1} parent=1 // loop_footer
      %s16 = sadd.s32 1, %s12
    $region7: #{patch_merging.1} parent=1 // loop_footer_branch
      %11 = sbr.rel target = $region3
    $region8: #{patch_merging.1} parent=1 // loop_exit
      _
    %741 = vsyncpa [#allocation3], 1
    %s742 = scalar_lea.sflag [#allocation3], 1
    %743 = vsyncpa %s742, 1

</llo_original>
